<compile_context>
chip_gen: v5e
topology: v5e:2x2
jax: 0.10.0
libtpu: 0.0.40
codegen_flags: <defaults>
</compile_context>

<pallas_src>
import functools
import math

import numpy as np
import jax
import jax.numpy as jnp
from jax.experimental import pallas as pl
from jax.experimental.pallas import tpu as pltpu

POSITIONAL_ENCODING_MAX_LEN = 64

# Below this input size a fused XLA add beats the pallas_call launch overhead.
_PALLAS_MIN_BYTES = 256 * 1024
# Target bytes for one x/out tile.  Pallas double-buffers each, so the working
# set is ~2*(x_tile + out_tile) + resident pe ~= 8-9 MiB: fits the default
# scoped VMEM on v5e/v6e/v7x.
_TARGET_TILE_BYTES = 2 * 1024 * 1024
# Cap on the statically unrolled per-batch slab loop inside the kernel.
_MAX_BATCH_UNROLL = 32
# Keep at least this many total grid steps (>= ~3 per TC after megacore split)
# so DMA-in / compute / DMA-out overlap instead of running serialized.
_MIN_GRID_STEPS = 6
# Explicit scoped-VMEM limit: generous, but with headroom under v7x's 64 MiB
# physical VMEM (v5e/v6e have 128 MiB physical).
_VMEM_LIMIT_BYTES = 48 * 1024 * 1024


def make_positional_encoding(d_model: int,
                             max_len: int = POSITIONAL_ENCODING_MAX_LEN) -> jnp.ndarray:
    """Deterministic pe buffer, shape [max_len, 1, d_model] (matches nn.Module init)."""
    position = jnp.arange(max_len, dtype=jnp.float32)[:, None]            # [max_len, 1]
    div_term = jnp.exp(jnp.arange(0, d_model, 2, dtype=jnp.float32)
                       * (-np.log(10000.0) / d_model))                     # [ceil(d/2)]
    sin = jnp.sin(position * div_term)
    cos = jnp.cos(position * div_term)
    # interleave sin/cos; the [:d_model] slice also handles odd d_model
    # (the literal PyTorch module would raise a shape error for odd d_model).
    pe = jnp.stack([sin, cos], axis=-1).reshape(max_len, -1)[:, :d_model]
    return pe[:, None, :]                                                  # [max_len, 1, d_model]


def _pe_add_kernel(x_ref, pe_ref, o_ref, *, bg: int, d_model: int, ts: int, sub: int):
    # x_ref / o_ref: (ts, bg*d_model)  lane-dense tile of the (S, B*D) view
    # pe_ref:        (S_pad, d_model)  resident (loaded once: constant index_map)
    row0 = pl.multiple_of(pl.program_id(0) * ts, sub)   # sublane-aligned pe row offset
    for b in range(bg):                                  # static unroll, bg <= 32 (typ.)
        c = b * d_model                                  # static column offset
        # Per-slab pe load keeps vreg pressure at one slab's worth; VMEM vld
        # slots have slack in this store/HBM-bound kernel.
        o_ref[:, c:c + d_model] = x_ref[:, c:c + d_model] + pe_ref[pl.ds(row0, ts), :]


def _pick_batch_group(B: int, D: int, itemsize: int, sub: int) -> int:
    """Batches per block column-group.

    Keeps a sub-row tile near the byte target, bounds the unrolled slab loop,
    and — when the batch axis is actually split — keeps the block width
    bg*D a multiple of 128 lanes (required by the (8,128) BlockSpec rule and
    keeps stores unmasked)."""
    by_bytes = _TARGET_TILE_BYTES // max(sub * D * itemsize, 1)
    bg = min(B, _MAX_BATCH_UNROLL, max(1, by_bytes))
    if bg >= B:
        return B                                  # full extent: always legal
    m = 128 // math.gcd(D, 128)                   # bg must be a multiple of m
    bg = (bg // m) * m
    if bg <= 0 or bg > _MAX_BATCH_UNROLL:
        # Cannot split the batch axis into 128-lane-aligned groups (e.g. odd
        # d_model): fall back to one group (full-extent width).
        return B
    return bg


def positional_encoding_forward(x: jnp.ndarray, pe: jnp.ndarray, *,
                                block_rows: int | None = None,
                                donate_x: bool = False,
                                force_pallas: bool = False) -> jnp.ndarray:
    """x: [seq_len, batch, d_model]; pe: [max_len, 1, d_model]."""
    S, B, D = x.shape
    max_len = pe.shape[0]
    if pe.shape != (max_len, 1, D):
        raise ValueError(f"pe shape {pe.shape} does not match d_model={D}")
    if S > max_len:
        raise ValueError(f"seq_len {S} > max_len {max_len}")

    # Tiny inputs: the fused XLA add is strictly faster than a kernel launch.
    if not force_pallas and x.size * x.dtype.itemsize < _PALLAS_MIN_BYTES:
        return x + pe[:S].astype(x.dtype)

    itemsize = x.dtype.itemsize
    sub = {1: 32, 2: 16, 4: 8}.get(itemsize, 8)          # sublane packing per dtype

    # ---- lane-axis (batch-group) tiling -------------------------------------
    bg = _pick_batch_group(B, D, itemsize, sub)
    num_j = pl.cdiv(B, bg)
    lane_block = bg * D                                   # mult of 128, or full B*D

    # ---- seq-axis tiling -----------------------------------------------------
    if block_rows is None:
        ts = max(1, _TARGET_TILE_BYTES // max(bg * D * itemsize, 1))
        # Keep >= _MIN_GRID_STEPS total steps for pipelining / megacore when
        # the sequence is long enough for that many sub-aligned tiles.
        want_i = pl.cdiv(_MIN_GRID_STEPS, num_j)
        if S >= want_i * sub:
            ts = min(ts, pl.cdiv(S, want_i))
    else:
        ts = block_rows
    if ts >= S:
        ts = S                                            # full extent: always legal
    else:
        ts = max(sub, (ts // sub) * sub)                  # sublane-aligned tile
    num_i = pl.cdiv(S, ts)
    grid = (num_i, num_j)

    # ---- lane-dense 2-D views (free, row-major reshapes) ---------------------
    x2 = x.reshape(S, B * D)

    # pe: pre-cast to x.dtype (review fix 7) and shape it to exactly the rows
    # the grid can touch, so the resident block's in-kernel pl.ds slice is
    # always in-bounds (pad rows only ever meet out-of-range x rows, which are
    # dropped on writeback).
    pe2 = pe.reshape(max_len, D).astype(x.dtype)
    s_pad = num_i * ts
    if s_pad <= max_len:
        pe_in = pe2[:s_pad]
    else:
        pe_in = jnp.pad(pe2, ((0, s_pad - max_len), (0, 0)))

    out2 = pl.pallas_call(
        functools.partial(_pe_add_kernel, bg=bg, d_model=D, ts=ts, sub=sub),
        out_shape=jax.ShapeDtypeStruct((S, B * D), x.dtype),
        grid=grid,
        in_specs=[
            pl.BlockSpec((ts, lane_block), lambda i, j: (i, j)),   # x tile
            pl.BlockSpec((s_pad, D), lambda i, j: (0, 0)),         # resident pe (one DMA)
        ],
        out_specs=pl.BlockSpec((ts, lane_block), lambda i, j: (i, j)),
        compiler_params=pltpu.CompilerParams(
            dimension_semantics=("parallel", "parallel"),          # megacore on v7x
            vmem_limit_bytes=_VMEM_LIMIT_BYTES,
        ),
        # out = x + pe can reuse x's HBM buffer when the caller donates x.
        input_output_aliases=({0: 0} if donate_x else {}),
    )(x2, pe_in)
    return out2.reshape(S, B, D)


def _reference(x, pe):
    return x + pe[: x.shape[0]].astype(x.dtype)


if __name__ == "__main__":
    key = jax.random.PRNGKey(0)
    k1, k2, k3, k4 = jax.random.split(key, 4)

    # odd d_model construction sanity check (PyTorch-equivalent truncation).
    assert make_positional_encoding(33).shape == (POSITIONAL_ENCODING_MAX_LEN, 1, 33)

    pe32 = make_positional_encoding(32)
    pe64 = make_positional_encoding(64)
    pe128 = make_positional_encoding(128)

    # 1) small canonical shape, lane-dense flattened width (4*32 = 128 lanes),
    #    single-tile grid.
    x1 = jax.random.normal(k1, (8, 4, 32), dtype=jnp.float32)
    out1 = jax.block_until_ready(
        positional_encoding_forward(x1, pe32, force_pallas=True))
    np.testing.assert_allclose(np.asarray(out1, np.float32),
                               np.asarray(_reference(x1, pe32), np.float32),
                               rtol=1e-6, atol=1e-6)

    # 2) multi-tile seq grid with a ragged last tile (grid_i = cdiv(40, 16) = 3).
    x2 = jax.random.normal(k2, (40, 2, 32), dtype=jnp.float32)
    out2 = jax.block_until_ready(
        positional_encoding_forward(x2, pe32, block_rows=16, force_pallas=True))
    np.testing.assert_allclose(np.asarray(out2, np.float32),
                               np.asarray(_reference(x2, pe32), np.float32),
                               rtol=1e-6, atol=1e-6)

    # 3) bf16 activations (pe pre-cast in the wrapper, 16-row bf16-aligned tiles).
    x3 = jax.random.normal(k3, (32, 2, 128), dtype=jnp.bfloat16)
    out3 = jax.block_until_ready(
        positional_encoding_forward(x3, pe128, block_rows=16, force_pallas=True))
    np.testing.assert_allclose(np.asarray(out3, np.float32),
                               np.asarray(_reference(x3, pe128), np.float32),
                               rtol=1e-2, atol=1e-2)

    # 4) batch-group (lane-axis) grid: B=36 > bg=32 -> grid (4, 2) with a ragged
    #    last batch group; exercises the second "parallel" axis.
    x4 = jax.random.normal(k4, (32, 36, 64), dtype=jnp.float32)
    out4 = jax.block_until_ready(
        positional_encoding_forward(x4, pe64, force_pallas=True))
    np.testing.assert_allclose(np.asarray(out4, np.float32),
                               np.asarray(_reference(x4, pe64), np.float32),
                               rtol=1e-6, atol=1e-6)

    # 5) tiny-input dispatch falls back to the fused XLA add.
    out5 = jax.block_until_ready(positional_encoding_forward(x1, pe32))
    np.testing.assert_allclose(np.asarray(out5, np.float32),
                               np.asarray(_reference(x1, pe32), np.float32),
                               rtol=1e-6, atol=1e-6)

    print("KERNEL_OK")
</pallas_src>

<mosaic_0001>
module attributes {stable_mosaic.version = 11 : i64} {
  func.func @_pe_add_kernel(%arg0: i32, %arg1: i32, %arg2: memref<8x128xf32, #tpu.memory_space<vmem>>, %arg3: memref<8x32xf32, #tpu.memory_space<vmem>>, %arg4: memref<8x128xf32, #tpu.memory_space<vmem>>) attributes {dimension_semantics = [#tpu.dimension_semantics<parallel>, #tpu.dimension_semantics<parallel>], iteration_bounds = array<i64: 1, 1>, scalar_prefetch = 0 : i64, scratch_operands = 0 : i64, tpu.core_type = #tpu.core_type<tc>, window_params = [{transform_indices = @transform_0, window_bounds = array<i64: 8, 128>}, {pipeline_mode = #tpu.pipeline_mode<synchronous>, transform_indices = @transform_1, window_bounds = array<i64: 8, 32>}, {transform_indices = @transform_2, window_bounds = array<i64: 8, 128>}]} {
    %c8_i32 = arith.constant 8 : i32
    %0 = arith.muli %arg0, %c8_i32 : i32
    %1 = tpu.assume_multiple %0, 8 : i32
    %c0 = arith.constant 0 : index
    %c0_0 = arith.constant 0 : index
    %2 = vector.load %arg2[%c0, %c0_0] : memref<8x128xf32, #tpu.memory_space<vmem>>, vector<8x32xf32>
    %3 = arith.index_cast %1 : i32 to index
    %c0_1 = arith.constant 0 : index
    %4 = vector.load %arg3[%3, %c0_1] : memref<8x32xf32, #tpu.memory_space<vmem>>, vector<8x32xf32>
    %5 = arith.addf %2, %4 : vector<8x32xf32>
    %c0_2 = arith.constant 0 : index
    %c0_3 = arith.constant 0 : index
    %6 = vector.load %arg4[%c0_2, %c0_3] : memref<8x128xf32, #tpu.memory_space<vmem>>, vector<8x32xf32>
    tpu.vector_store %arg4[%c0_2, %c0_3], %5 {strides = array<i32>} : memref<8x128xf32, #tpu.memory_space<vmem>>, vector<8x32xf32>,
    %c0_4 = arith.constant 0 : index
    %c32 = arith.constant 32 : index
    %7 = vector.load %arg2[%c0_4, %c32] : memref<8x128xf32, #tpu.memory_space<vmem>>, vector<8x32xf32>
    %8 = arith.index_cast %1 : i32 to index
    %c0_5 = arith.constant 0 : index
    %9 = vector.load %arg3[%8, %c0_5] : memref<8x32xf32, #tpu.memory_space<vmem>>, vector<8x32xf32>
    %10 = arith.addf %7, %9 : vector<8x32xf32>
    %c0_6 = arith.constant 0 : index
    %c32_7 = arith.constant 32 : index
    %11 = vector.load %arg4[%c0_6, %c32_7] : memref<8x128xf32, #tpu.memory_space<vmem>>, vector<8x32xf32>
    tpu.vector_store %arg4[%c0_6, %c32_7], %10 {strides = array<i32>} : memref<8x128xf32, #tpu.memory_space<vmem>>, vector<8x32xf32>,
    %c0_8 = arith.constant 0 : index
    %c64 = arith.constant 64 : index
    %12 = vector.load %arg2[%c0_8, %c64] : memref<8x128xf32, #tpu.memory_space<vmem>>, vector<8x32xf32>
    %13 = arith.index_cast %1 : i32 to index
    %c0_9 = arith.constant 0 : index
    %14 = vector.load %arg3[%13, %c0_9] : memref<8x32xf32, #tpu.memory_space<vmem>>, vector<8x32xf32>
    %15 = arith.addf %12, %14 : vector<8x32xf32>
    %c0_10 = arith.constant 0 : index
    %c64_11 = arith.constant 64 : index
    %16 = vector.load %arg4[%c0_10, %c64_11] : memref<8x128xf32, #tpu.memory_space<vmem>>, vector<8x32xf32>
    tpu.vector_store %arg4[%c0_10, %c64_11], %15 {strides = array<i32>} : memref<8x128xf32, #tpu.memory_space<vmem>>, vector<8x32xf32>,
    %c0_12 = arith.constant 0 : index
    %c96 = arith.constant 96 : index
    %17 = vector.load %arg2[%c0_12, %c96] : memref<8x128xf32, #tpu.memory_space<vmem>>, vector<8x32xf32>
    %18 = arith.index_cast %1 : i32 to index
    %c0_13 = arith.constant 0 : index
    %19 = vector.load %arg3[%18, %c0_13] : memref<8x32xf32, #tpu.memory_space<vmem>>, vector<8x32xf32>
    %20 = arith.addf %17, %19 : vector<8x32xf32>
    %c0_14 = arith.constant 0 : index
    %c96_15 = arith.constant 96 : index
    %21 = vector.load %arg4[%c0_14, %c96_15] : memref<8x128xf32, #tpu.memory_space<vmem>>, vector<8x32xf32>
    tpu.vector_store %arg4[%c0_14, %c96_15], %20 {strides = array<i32>} : memref<8x128xf32, #tpu.memory_space<vmem>>, vector<8x32xf32>,
    return
  }
  func.func @transform_0(%arg0: i32, %arg1: i32) -> (i32, i32) {
    %c0_i32 = arith.constant 0 : i32
    return %arg0, %arg1 : i32, i32
  }
  func.func @transform_1(%arg0: i32, %arg1: i32) -> (i32, i32) {
    %c0_i32 = arith.constant 0 : i32
    %c0_i32_0 = arith.constant 0 : i32
    %c0_i32_1 = arith.constant 0 : i32
    return %c0_i32, %c0_i32_0 : i32, i32
  }
  func.func @transform_2(%arg0: i32, %arg1: i32) -> (i32, i32) {
    %c0_i32 = arith.constant 0 : i32
    return %arg0, %arg1 : i32, i32
  }
}

</mosaic_0001>

<llo_original>
// kernel: tpu_custom_call.1
$region0: #{tpu_custom_call.1}
  #allocation0 [shape = 'u32[]', space=smem, size = 0x4, offset = 0x4, fixed_abs, tag = 'smem constant byte address 0x4 - core index']
  #allocation1 [shape = 'u32[72,128]{1,0:T(1,128)}', space=vmem, size = 0x9000, scoped, tag = 'internal scratch']
  %s0 = inlined_call_operand.hbm [shape: f32[8,128], index: 0, kind: input, shape index: {}]
  %s1 = inlined_call_operand.hbm [shape: f32[8,32], index: 1, kind: input, shape index: {}]
  %s2 = inlined_call_operand.hbm [shape: f32[8,128], index: 2, kind: output, shape index: {}]
  %s3 = sld [smem:[#allocation0]]
  $region26: #{tpu_custom_call.1} parent=0
    _
  %s5 = ssub.s32 1, %s3
  %s6 = scalar_select 0, %s5, %s3
  $region1: #{tpu_custom_call.1} parent=0
    #allocation2 [shape = 'u8[4096]{0}', space=vmem, size = 0x1000, scoped, tag = 'input window, operand 0, single buffered']
    #allocation3 [shape = 's32[1]{0}', space=sflag, size = 0x4, scoped, tag = 'scoped memory for tpu_custom_call.1']
    #allocation4 [shape = 's32[1]{0}', space=sflag, size = 0x4, scoped, tag = 'scoped memory for tpu_custom_call.1']
    #allocation5 [shape = 'u8[4096]{0}', space=vmem, size = 0x1000, scoped, tag = 'input window, operand 1, single buffered']
    #allocation6 [shape = 's32[1]{0}', space=sflag, size = 0x4, scoped, tag = 'scoped memory for tpu_custom_call.1']
    #allocation7 [shape = 'u8[4096]{0}', space=vmem, size = 0x1000, scoped, tag = 'output window, operand 0, single buffered']
    %7 = vsyncpa [#allocation3], 0
    %8 = vsyncpa [#allocation6], 0
    %9 = vsyncpa [#allocation4], 0
    // Predicated region
    $region2: #{tpu_custom_call.1} parent=1 // pred_check
      _
    $region3: #{tpu_custom_call.1} parent=1 // pred_check_branch
      %11 = sbr.rel (0) target = $region5
    $region4: #{tpu_custom_call.1} parent=1 // pred_region
      %13 = vsyncadd [#allocation3], 0
      %s15 = sshll.u32 %s0, 4
      %s16 = int_to_ptr.hbm [resolvable:$true] %s15
      %s17 = sshll.u32 [#allocation2], 4
      %s18 = int_to_ptr.vmem [resolvable:$true] %s17
      %20 = dma.hbm_to_vmem [thread:$0]  %s16, 128, %s18, [#allocation3]
    $region5: #{tpu_custom_call.1} parent=1 // pred_fallthru
      _
    // Predicated region
    $region6: #{tpu_custom_call.1} parent=1 // pred_check
      _
    $region7: #{tpu_custom_call.1} parent=1 // pred_check_branch
      %22 = sbr.rel (0) target = $region9
    $region8: #{tpu_custom_call.1} parent=1 // pred_region
      %24 = vsyncadd [#allocation6], 0
      %s26 = sshll.u32 %s1, 4
      %s27 = int_to_ptr.hbm [resolvable:$true] %s26
      %s28 = sshll.u32 [#allocation5], 4
      %s29 = int_to_ptr.vmem [resolvable:$true] %s28
      %31 = dma.hbm_to_vmem [thread:$0]  %s27, 128, %s29, [#allocation6]
    $region9: #{tpu_custom_call.1} parent=1 // pred_fallthru
      _
    // Predicated region
    $region10: #{tpu_custom_call.1} parent=1 // pred_check
      _
    $region11: #{tpu_custom_call.1} parent=1 // pred_check_branch
      %33 = sbr.rel (0) target = $region13
    $region12: #{tpu_custom_call.1} parent=1 // pred_region
      %35 = dma.done [#allocation3], 128
    $region13: #{tpu_custom_call.1} parent=1 // pred_fallthru
      _
    // Predicated region
    $region14: #{tpu_custom_call.1} parent=1 // pred_check
      _
    $region15: #{tpu_custom_call.1} parent=1 // pred_check_branch
      %37 = sbr.rel (0) target = $region17
    $region16: #{tpu_custom_call.1} parent=1 // pred_region
      %39 = dma.done [#allocation6], 128
    $region17: #{tpu_custom_call.1} parent=1 // pred_fallthru
      _
    %s40 = smul.u32 0, 8
    %v41 = vld [vmem:[#allocation2] sm:$0xff]
    %s42 = scalar_lea.vmem [#allocation5], %s40
    %v43 = vld [vmem:[%s42] sm:$0xff]
    %v44 = vadd.f32 %v41, %v43
    %vm45 = vcmask 261120
    %46 = vst.msk [vmem:[#allocation7] sm:$0xff] %vm45, %v44
    %v47 = vld [vmem:[#allocation2] sm:$0xff]
    %v48 = vld [vmem:[%s42] sm:$0xff]
    %50 = vrot.lane.b32.xlu0 %v48, 32
    %v51 = vpop.permute.xlu0 %50
    %v53 = vadd.f32 %v47, %v51
    %vm54 = vcmask 523520
    %55 = vst.msk [vmem:[#allocation7] sm:$0xff] %vm54, %v53
    %v56 = vld [vmem:[#allocation2] sm:$0xff]
    %v57 = vld [vmem:[%s42] sm:$0xff]
    %59 = vrot.lane.b32.xlu0 %v57, 64
    %v60 = vpop.permute.xlu0 %59
    %v62 = vadd.f32 %v56, %v60
    %vm63 = vcmask 785920
    %64 = vst.msk [vmem:[#allocation7] sm:$0xff] %vm63, %v62
    %v65 = vld [vmem:[#allocation2] sm:$0xff]
    %v66 = vld [vmem:[%s42] sm:$0xff]
    %68 = vrot.lane.b32.xlu0 %v66, 96
    %v69 = vpop.permute.xlu0 %68
    %v71 = vadd.f32 %v65, %v69
    %vm72 = vcmask 1048320
    %73 = vst.msk [vmem:[#allocation7] sm:$0xff] %vm72, %v71
    // Predicated region
    $region18: #{tpu_custom_call.1} parent=1 // pred_check
      _
    $region19: #{tpu_custom_call.1} parent=1 // pred_check_branch
      %75 = sbr.rel (0) target = $region21
    $region20: #{tpu_custom_call.1} parent=1 // pred_region
      %77 = vsyncadd [#allocation4], 0
      %s79 = sshll.u32 [#allocation7], 4
      %s80 = int_to_ptr.vmem [resolvable:$true] %s79
      %s81 = sshll.u32 %s2, 4
      %s82 = int_to_ptr.hbm [resolvable:$true] %s81
      %84 = dma.vmem_to_hbm [thread:$0]  %s80, 128, %s82, [#allocation4]
    $region21: #{tpu_custom_call.1} parent=1 // pred_fallthru
      _
    // Predicated region
    $region22: #{tpu_custom_call.1} parent=1 // pred_check
      _
    $region23: #{tpu_custom_call.1} parent=1 // pred_check_branch
      %86 = sbr.rel (0) target = $region25
    $region24: #{tpu_custom_call.1} parent=1 // pred_region
      %88 = dma.done [#allocation4], 128
    $region25: #{tpu_custom_call.1} parent=1 // pred_fallthru
      _
    %89 = vsyncpa [#allocation3], 1
    %90 = vsyncpa [#allocation6], 1
    %91 = vsyncpa [#allocation4], 1

</llo_original>
